<compile_context>
chip_gen: v6e
topology: v6e:2x2x1
jax: 0.10.0
libtpu: 0.0.40
codegen_flags: <defaults>
</compile_context>

<pallas_src>
import functools
import numpy as np
import jax
import jax.numpy as jnp
from jax import lax
from jax.experimental import pallas as pl
from jax.experimental.pallas import tpu as pltpu

PAD = 0
NEG_INF = -1e9


# --------------------------- small helpers -----------------------------------

def _round_up(n, m):
    return ((n + m - 1) // m) * m


def _row_plan(M, max_tile=256):
    """Pick (padded_M, row_tile): row_tile is a multiple of 8 and divides padded_M."""
    Mp = _round_up(max(M, 8), 8)
    if Mp <= max_tile:
        return Mp, Mp
    Mp = _round_up(M, max_tile)
    return Mp, max_tile


def _pad_rows(x, Mp):
    M = x.shape[0]
    if Mp == M:
        return x
    return jnp.pad(x, ((0, Mp - M),) + ((0, 0),) * (x.ndim - 1))


def _parallel(n=1):
    return pltpu.CompilerParams(dimension_semantics=("parallel",) * n)


# --------------------------- Pallas kernels ---------------------------------

def _linear_kernel(x_ref, w_ref, b_ref, o_ref, *, relu):
    x = x_ref[...].astype(jnp.float32)
    w = w_ref[...].astype(jnp.float32)
    y = jnp.dot(x, w, preferred_element_type=jnp.float32) + b_ref[...]
    if relu:
        y = jnp.maximum(y, 0.0)
    o_ref[...] = y.astype(o_ref.dtype)


def pallas_linear(x, w, b, relu=False):
    """x: [M, K] @ w: [K, N] + b (optionally fused ReLU), row-tiled over M."""
    M, K = x.shape
    N = w.shape[1]
    Mp, tm = _row_plan(M)
    out = pl.pallas_call(
        functools.partial(_linear_kernel, relu=relu),
        out_shape=jax.ShapeDtypeStruct((Mp, N), jnp.float32),
        grid=(Mp // tm,),
        in_specs=[
            pl.BlockSpec((tm, K), lambda i: (i, 0)),
            pl.BlockSpec((K, N), lambda i: (0, 0)),
            pl.BlockSpec((1, N), lambda i: (0, 0)),
        ],
        out_specs=pl.BlockSpec((tm, N), lambda i: (i, 0)),
        compiler_params=_parallel(1),
    )(_pad_rows(x, Mp), w, b.reshape(1, N))
    return out[:M]


def _ln_kernel(*refs, eps, relu, has_res, has_mask):
    idx = 0
    x_ref = refs[idx]; idx += 1
    res_ref = None
    mask_ref = None
    if has_res:
        res_ref = refs[idx]; idx += 1
    if has_mask:
        mask_ref = refs[idx]; idx += 1
    g_ref, b_ref, o_ref = refs[idx], refs[idx + 1], refs[idx + 2]
    x = x_ref[...].astype(jnp.float32)
    if has_res:
        x = x + res_ref[...].astype(jnp.float32)
    mu = jnp.mean(x, axis=-1, keepdims=True)
    var = jnp.mean(jnp.square(x - mu), axis=-1, keepdims=True)
    y = (x - mu) * lax.rsqrt(var + eps) * g_ref[...] + b_ref[...]
    if relu:
        y = jnp.maximum(y, 0.0)
    if has_mask:
        y = y * mask_ref[...]
    o_ref[...] = y.astype(o_ref.dtype)


def pallas_layernorm(x, gamma, beta, residual=None, mask=None, relu=False, eps=1e-5):
    """LayerNorm over last dim with optional fused residual add, ReLU and
    row-mask multiply.  x: [M, D], mask: [M, 1]."""
    M, D = x.shape
    Mp, tm = _row_plan(M)
    args = [_pad_rows(x, Mp)]
    specs = [pl.BlockSpec((tm, D), lambda i: (i, 0))]
    if residual is not None:
        args.append(_pad_rows(residual, Mp))
        specs.append(pl.BlockSpec((tm, D), lambda i: (i, 0)))
    if mask is not None:
        args.append(_pad_rows(mask, Mp))
        specs.append(pl.BlockSpec((tm, 1), lambda i: (i, 0)))
    args += [gamma.reshape(1, D), beta.reshape(1, D)]
    specs += [pl.BlockSpec((1, D), lambda i: (0, 0)),
              pl.BlockSpec((1, D), lambda i: (0, 0))]
    out = pl.pallas_call(
        functools.partial(_ln_kernel, eps=eps, relu=relu,
                          has_res=residual is not None,
                          has_mask=mask is not None),
        out_shape=jax.ShapeDtypeStruct((Mp, D), jnp.float32),
        grid=(Mp // tm,),
        in_specs=specs,
        out_specs=pl.BlockSpec((tm, D), lambda i: (i, 0)),
        compiler_params=_parallel(1),
    )(*args)
    return out[:M]


def _ln_head_kernel(x_ref, g_ref, b_ref, w_ref, hb_ref, o_ref, *, eps, relu_out):
    x = x_ref[...].astype(jnp.float32)
    mu = jnp.mean(x, axis=-1, keepdims=True)
    var = jnp.mean(jnp.square(x - mu), axis=-1, keepdims=True)
    y = (x - mu) * lax.rsqrt(var + eps) * g_ref[...] + b_ref[...]
    y = jnp.maximum(y, 0.0)
    o = jnp.dot(y, w_ref[...].astype(jnp.float32),
                preferred_element_type=jnp.float32) + hb_ref[...]
    if relu_out:
        o = jnp.maximum(o, 0.0)
    o_ref[...] = o.astype(o_ref.dtype)


def pallas_ln_relu_head(x, gamma, beta, w, b, relu_out, eps=1e-5):
    """Fused LayerNorm -> ReLU -> Linear(D -> 1) for the variance predictors."""
    M, D = x.shape
    N = w.shape[1]
    Mp, tm = _row_plan(M)
    out = pl.pallas_call(
        functools.partial(_ln_head_kernel, eps=eps, relu_out=relu_out),
        out_shape=jax.ShapeDtypeStruct((Mp, N), jnp.float32),
        grid=(Mp // tm,),
        in_specs=[
            pl.BlockSpec((tm, D), lambda i: (i, 0)),
            pl.BlockSpec((1, D), lambda i: (0, 0)),
            pl.BlockSpec((1, D), lambda i: (0, 0)),
            pl.BlockSpec((D, N), lambda i: (0, 0)),
            pl.BlockSpec((1, N), lambda i: (0, 0)),
        ],
        out_specs=pl.BlockSpec((tm, N), lambda i: (i, 0)),
        compiler_params=_parallel(1),
    )(_pad_rows(x, Mp), gamma.reshape(1, D), beta.reshape(1, D), w, b.reshape(1, N))
    return out[:M]


def _conv1d_kernel(x_ref, w_ref, b_ref, o_ref, *, ksize, c_in, t_out, relu):
    x = x_ref[0].astype(jnp.float32)            # (Tp, C_in)
    w = w_ref[...].astype(jnp.float32)          # (k*C_in, C_out)
    acc = jnp.dot(x[0:t_out, :], w[0:c_in, :], preferred_element_type=jnp.float32)
    for j in range(1, ksize):                    # taps accumulated in-kernel
        acc = acc + jnp.dot(x[j:j + t_out, :], w[j * c_in:(j + 1) * c_in, :],
                            preferred_element_type=jnp.float32)
    acc = acc + b_ref[...]
    if relu:
        acc = jnp.maximum(acc, 0.0)
    o_ref[0] = acc.astype(o_ref.dtype)


def pallas_conv1d(x, w_mat, b, kernel_size, padding, relu=False):
    """Channels-last same-length Conv1d.  x: [B, T, C_in], w_mat: [k*C_in, C_out]
    (tap-major, i.e. torch_w.permute(2, 1, 0).reshape(k*C_in, C_out))."""
    B, T, C = x.shape
    C_out = w_mat.shape[1]
    xp = jnp.pad(x, ((0, 0), (padding, padding), (0, 0)))
    Tp = T + 2 * padding
    return pl.pallas_call(
        functools.partial(_conv1d_kernel, ksize=kernel_size, c_in=C, t_out=T, relu=relu),
        out_shape=jax.ShapeDtypeStruct((B, T, C_out), jnp.float32),
        grid=(B,),
        in_specs=[
            pl.BlockSpec((1, Tp, C), lambda b: (b, 0, 0)),
            pl.BlockSpec((kernel_size * C, C_out), lambda b: (0, 0)),
            pl.BlockSpec((1, C_out), lambda b: (0, 0)),
        ],
        out_specs=pl.BlockSpec((1, T, C_out), lambda b: (b, 0, 0)),
        compiler_params=_parallel(1),
    )(xp, w_mat, b.reshape(1, C_out))


def _flash_attn_kernel(q_ref, k_ref, v_ref, m_ref, o_ref, m_sc, l_sc, acc_sc, *, scale):
    ki = pl.program_id(3)

    @pl.when(ki == 0)
    def _():
        m_sc[...] = jnp.full_like(m_sc, -jnp.inf)
        l_sc[...] = jnp.zeros_like(l_sc)
        acc_sc[...] = jnp.zeros_like(acc_sc)

    q = q_ref[0, 0].astype(jnp.float32)          # (tq, dk)
    k = k_ref[0, 0].astype(jnp.float32)          # (tk, dk)
    v = v_ref[0, 0].astype(jnp.float32)          # (tk, dv)
    s = jnp.dot(q, k.T, preferred_element_type=jnp.float32) * scale + m_ref[0]
    m_new = jnp.maximum(m_sc[...], jnp.max(s, axis=-1, keepdims=True))
    alpha = jnp.exp(m_sc[...] - m_new)
    p = jnp.exp(s - m_new)
    l_sc[...] = alpha * l_sc[...] + jnp.sum(p, axis=-1, keepdims=True)
    acc_sc[...] = alpha * acc_sc[...] + jnp.dot(p, v, preferred_element_type=jnp.float32)
    m_sc[...] = m_new

    @pl.when(ki == pl.num_programs(3) - 1)
    def _():
        o_ref[0, 0] = (acc_sc[...] * pl.reciprocal(l_sc[...], approx=True)
                       ).astype(o_ref.dtype)


def pallas_attention(q, k, v, key_neg_mask, scale):
    """Flash-style attention.  q, k: [B, H, S, dk], v: [B, H, S, dv],
    key_neg_mask: [B, 1, S] additive mask (0 = real key, -1e9 = padded key)."""
    B, H, S, dk = q.shape
    dv = v.shape[-1]
    if S <= 128:
        Sp = _round_up(S, 8)
        tq = tk = Sp
    else:
        tq = tk = 128
        Sp = _round_up(S, 128)
    if Sp != S:
        pad4 = ((0, 0), (0, 0), (0, Sp - S), (0, 0))
        q = jnp.pad(q, pad4)
        k = jnp.pad(k, pad4)
        v = jnp.pad(v, pad4)
        key_neg_mask = jnp.pad(key_neg_mask, ((0, 0), (0, 0), (0, Sp - S)),
                               constant_values=NEG_INF)
    out = pl.pallas_call(
        functools.partial(_flash_attn_kernel, scale=scale),
        out_shape=jax.ShapeDtypeStruct((B, H, Sp, dv), jnp.float32),
        grid=(B, H, Sp // tq, Sp // tk),
        in_specs=[
            pl.BlockSpec((1, 1, tq, dk), lambda b, h, qi, ki: (b, h, qi, 0)),
            pl.BlockSpec((1, 1, tk, dk), lambda b, h, qi, ki: (b, h, ki, 0)),
            pl.BlockSpec((1, 1, tk, dv), lambda b, h, qi, ki: (b, h, ki, 0)),
            pl.BlockSpec((1, 1, tk), lambda b, h, qi, ki: (b, 0, ki)),
        ],
        out_specs=pl.BlockSpec((1, 1, tq, dv), lambda b, h, qi, ki: (b, h, qi, 0)),
        scratch_shapes=[
            pltpu.VMEM((tq, 1), jnp.float32),
            pltpu.VMEM((tq, 1), jnp.float32),
            pltpu.VMEM((tq, dv), jnp.float32),
        ],
        compiler_params=pltpu.CompilerParams(
            dimension_semantics=("parallel", "parallel", "parallel", "arbitrary")),
    )(q, k, v, key_neg_mask)
    return out[:, :, :S, :]


# --------------------------- model pieces ------------------------------------

def multi_head_attention(p, x, key_neg_mask, non_pad_mask2d, n_head, d_k, d_v):
    B, T, D = x.shape
    M = B * T
    x2d = x.reshape(M, D)
    # fused QKV projection (one matmul instead of three)
    qkv = pallas_linear(x2d, p["w_qkv"], p["b_qkv"])                    # [M, H*(2dk+dv)]
    q = qkv[:, :n_head * d_k].reshape(B, T, n_head, d_k).transpose(0, 2, 1, 3)
    k = qkv[:, n_head * d_k:2 * n_head * d_k].reshape(B, T, n_head, d_k).transpose(0, 2, 1, 3)
    v = qkv[:, 2 * n_head * d_k:].reshape(B, T, n_head, d_v).transpose(0, 2, 1, 3)
    ctx = pallas_attention(q, k, v, key_neg_mask, 1.0 / float(np.sqrt(d_k)))
    ctx = ctx.transpose(0, 2, 1, 3).reshape(M, n_head * d_v)
    out = pallas_linear(ctx, p["fc_w"], p["fc_b"])
    # fused: LN(out + residual) * non_pad_mask
    out = pallas_layernorm(out, p["ln_g"], p["ln_b"],
                           residual=x2d, mask=non_pad_mask2d)
    return out.reshape(B, T, D)


def pos_ffn(p, x, non_pad_mask2d, k1, pad1, k2, pad2):
    B, T, D = x.shape
    out = pallas_conv1d(x, p["w1"], p["b1"], k1, pad1, relu=True)
    out = pallas_conv1d(out, p["w2"], p["b2"], k2, pad2)
    out = pallas_layernorm(out.reshape(B * T, D), p["ln_g"], p["ln_b"],
                           residual=x.reshape(B * T, D), mask=non_pad_mask2d)
    return out.reshape(B, T, D)


def fft_block(p, x, non_pad_mask2d, key_neg_mask, cfg):
    out = multi_head_attention(p["attn"], x, key_neg_mask, non_pad_mask2d,
                               cfg["n_head"], cfg["d_k"], cfg["d_v"])
    out = pos_ffn(p["ffn"], out, non_pad_mask2d,
                  cfg["fft_conv1d_kernel"][0], cfg["fft_conv1d_padding"][0],
                  cfg["fft_conv1d_kernel"][1], cfg["fft_conv1d_padding"][1])
    return out


def encoder_fwd(p, src_seq, src_pos, cfg):
    B, T = src_seq.shape
    key_neg_mask = jnp.where(src_seq == PAD, NEG_INF, 0.0).astype(jnp.float32)[:, None, :]
    non_pad_mask2d = (src_seq != PAD).astype(jnp.float32).reshape(B * T, 1)
    x = p["word_emb"][src_seq] + p["pos_table"][src_pos]
    for layer in p["layers"]:
        x = fft_block(layer, x, non_pad_mask2d, key_neg_mask, cfg)
    return x


def variance_predictor_fwd(p, x, cfg, final_relu):
    B, T, _ = x.shape
    k = cfg["duration_predictor_kernel_size"]
    pad = k // 2
    filt = p["ln1_g"].shape[0]
    out = pallas_conv1d(x, p["w1"], p["b1"], k, pad)
    out = pallas_layernorm(out.reshape(B * T, filt), p["ln1_g"], p["ln1_b"], relu=True)
    out = pallas_conv1d(out.reshape(B, T, filt), p["w2"], p["b2"], k, pad)
    # fused: LN -> ReLU -> Linear(filt -> 1) [-> ReLU for durations]
    out = pallas_ln_relu_head(out.reshape(B * T, filt), p["ln2_g"], p["ln2_b"],
                              p["lw"], p["lb"], relu_out=final_relu)
    return out.reshape(B, T)


def length_regulator_fwd(p, x, alpha, cfg):
    """Inference branch of LengthRegulator: round durations, expand via gather."""
    B, T, _ = x.shape
    dur_pred = variance_predictor_fwd(p["dur"], x, cfg, final_relu=True)       # [B, T]
    durations = ((dur_pred + 0.5) * alpha).astype(jnp.int32)                   # trunc like .int()
    totals = jnp.sum(durations, axis=-1)                                       # [B]
    # data-dependent output length -> one scalar host sync (eager script).
    # TODO(synk): a static / bucketed max mel length would allow end-to-end jit.
    expand_max_len = max(int(jax.device_get(jnp.max(totals))), 1)
    L = _round_up(expand_max_len, 8)                     # bucket for tile alignment
    cum = jnp.cumsum(durations, axis=-1)                                       # [B, T]
    frames = jnp.arange(L, dtype=jnp.int32)
    # per-frame source token index (replaces the [B, L, T] align matrix + bmm)
    src = jnp.sum(frames[None, :, None] >= cum[:, None, :], axis=-1)           # [B, L]
    valid = frames[None, :] < totals[:, None]                                  # [B, L]
    src = jnp.minimum(src, T - 1)
    out = jnp.take_along_axis(x, src[:, :, None], axis=1) * valid[:, :, None].astype(x.dtype)
    # reference mel_pos = 1..expand_max_len for every batch entry; bucket tail = PAD
    mel_pos = jnp.where(frames[None, :] < expand_max_len, frames[None, :] + 1, 0)
    mel_pos = jnp.broadcast_to(mel_pos, (B, L)).astype(jnp.int32)
    return out, mel_pos, expand_max_len


def variance_embed_fwd(p, x, cfg):
    pred = variance_predictor_fwd(p["vp"], x, cfg, final_relu=False)           # [B, L]
    idx = jnp.clip(jnp.searchsorted(p["bins"], pred), 0, p["emb"].shape[0] - 1)
    return pred, p["emb"][idx]                                                 # [B,L], [B,L,F]


def decoder_fwd(p, x, pos, cfg):
    B, L, _ = x.shape
    key_neg_mask = jnp.where(pos == PAD, NEG_INF, 0.0).astype(jnp.float32)[:, None, :]
    non_pad_mask2d = (pos != PAD).astype(jnp.float32).reshape(B * L, 1)
    # NOTE: positions > max_seq_len would clamp into the table (same as the
    # previous version / JAX gather semantics); sized adequately for this test.
    pos_idx = jnp.minimum(pos, p["pos_table"].shape[0] - 1)
    out = x + p["pos_table"][pos_idx]
    for layer in p["layers"]:
        out = fft_block(layer, out, non_pad_mask2d, key_neg_mask, cfg)
    return out


def fastspeech_forward(params, src_seq, src_pos, cfg, alpha=1.0):
    # eval-mode forward (training branch needs targets / pyworld / librosa)
    encoded = encoder_fwd(params["encoder"], src_seq, src_pos, cfg)
    length, mel_pos, mel_len = length_regulator_fwd(
        params["length_regulator"], encoded, alpha, cfg)
    pitch, pitch_emb = variance_embed_fwd(params["pitch_predictor"], length, cfg)
    energy, energy_emb = variance_embed_fwd(params["energy_predictor"], length, cfg)
    decoded = decoder_fwd(params["decoder"], length + pitch_emb + energy_emb, mel_pos, cfg)
    B, L, D = decoded.shape
    mel = pallas_linear(decoded.reshape(B * L, D),
                        params["mel_w"], params["mel_b"]).reshape(B, L, -1)
    # strip the alignment-bucketing pad back to the true batch-max expanded length
    mel = mel[:, :mel_len]
    mel_pos = mel_pos[:, :mel_len]
    pitch = pitch[:, :mel_len]
    energy = energy[:, :mel_len]
    return mel, mel_pos, energy, pitch
    # TODO(synk): training branch (mask_tensor with mel_max_length, target-driven
    # LR / pitch / energy) and get_pitch/get_energy (pyworld/librosa) not ported.


# --------------------------- parameter init ----------------------------------

def _lin_init(key, d_in, d_out, scale=0.1, b_const=0.0):
    w = scale * jax.random.normal(key, (d_in, d_out), jnp.float32)
    return w, jnp.full((d_out,), b_const, jnp.float32)


def _conv_init(key, c_in, c_out, ksz, scale=0.1):
    w = scale * jax.random.normal(key, (ksz * c_in, c_out), jnp.float32)
    return w, jnp.zeros((c_out,), jnp.float32)


def _ln_init(d):
    return jnp.ones((d,), jnp.float32), jnp.zeros((d,), jnp.float32)


def _sinusoid_table(n_position, d_hid):
    pos = np.arange(n_position)[:, None].astype(np.float64)
    div = np.power(10000.0, 2.0 * (np.arange(d_hid) // 2) / d_hid)
    tbl = pos / div
    tbl[:, 0::2] = np.sin(tbl[:, 0::2])
    tbl[:, 1::2] = np.cos(tbl[:, 1::2])
    tbl[PAD] = 0.0
    return jnp.asarray(tbl, jnp.float32)


def _init_fft_layer(key, cfg):
    d, dk, dv, nh, d_inner = (cfg["encoder_dim"], cfg["d_k"], cfg["d_v"],
                              cfg["n_head"], cfg["conv_filter"])
    ks = jax.random.split(key, 6)
    wq, bq = _lin_init(ks[0], d, nh * dk)
    wk, bk = _lin_init(ks[1], d, nh * dk)
    wv, bv = _lin_init(ks[2], d, nh * dv)
    # fused QKV weight (equivalent to concatenating the three torch Linears along out-dim)
    w_qkv = jnp.concatenate([wq, wk, wv], axis=1)
    b_qkv = jnp.concatenate([bq, bk, bv], axis=0)
    fw, fb = _lin_init(ks[3], nh * dv, d)
    g1, b1 = _ln_init(d)
    w1, bb1 = _conv_init(ks[4], d, d_inner, cfg["fft_conv1d_kernel"][0])
    w2, bb2 = _conv_init(ks[5], d_inner, d, cfg["fft_conv1d_kernel"][1])
    g2, b2 = _ln_init(d)
    return {
        "attn": {"w_qkv": w_qkv, "b_qkv": b_qkv, "fc_w": fw, "fc_b": fb,
                 "ln_g": g1, "ln_b": b1},
        "ffn": {"w1": w1, "b1": bb1, "w2": w2, "b2": bb2, "ln_g": g2, "ln_b": b2},
    }


def _init_variance_predictor(key, d_in, filt, ksz, final_bias):
    ks = jax.random.split(key, 3)
    w1, b1 = _conv_init(ks[0], d_in, filt, ksz)
    w2, b2 = _conv_init(ks[1], filt, filt, ksz)
    lw, lb = _lin_init(ks[2], filt, 1, b_const=final_bias)
    g1, be1 = _ln_init(filt)
    g2, be2 = _ln_init(filt)
    return {"w1": w1, "b1": b1, "ln1_g": g1, "ln1_b": be1,
            "w2": w2, "b2": b2, "ln2_g": g2, "ln2_b": be2, "lw": lw, "lb": lb}


def init_fastspeech_params(key, cfg):
    keys = jax.random.split(key, 16)
    d = cfg["encoder_dim"]
    filt = cfg["duration_predictor_filter_size"]
    ksz = cfg["duration_predictor_kernel_size"]
    word_emb = 0.1 * jax.random.normal(keys[0], (cfg["vocab_size"], d), jnp.float32)
    word_emb = word_emb.at[PAD].set(0.0)
    pos_table = _sinusoid_table(cfg["max_seq_len"] + 1, d)

    enc_layers = [_init_fft_layer(k, cfg)
                  for k in jax.random.split(keys[1], cfg["encoder_n_layer"])]
    dec_layers = [_init_fft_layer(k, cfg)
                  for k in jax.random.split(keys[2], cfg["decoder_n_layer"])]

    bins = jnp.linspace(-1.0, 1.0, 255, dtype=jnp.float32)
    pitch_emb = 0.1 * jax.random.normal(keys[5], (256, filt), jnp.float32)
    energy_emb = 0.1 * jax.random.normal(keys[6], (256, filt), jnp.float32)
    mel_w, mel_b = _lin_init(keys[7], cfg["decoder_dim"], cfg["num_mels"])

    return {
        "encoder": {"word_emb": word_emb, "pos_table": pos_table, "layers": enc_layers},
        "decoder": {"pos_table": pos_table, "layers": dec_layers},
        "length_regulator": {"dur": _init_variance_predictor(keys[3], d, filt, ksz, final_bias=1.0)},
        "pitch_predictor": {"vp": _init_variance_predictor(keys[4], d, filt, ksz, final_bias=0.0),
                            "bins": bins, "emb": pitch_emb},
        "energy_predictor": {"vp": _init_variance_predictor(keys[8], d, filt, ksz, final_bias=0.0),
                             "bins": bins, "emb": energy_emb},
        # FastSpeech.energy_embedding exists in __init__ but is unused in forward:
        "unused_energy_embedding": 0.1 * jax.random.normal(keys[9], (256, filt), jnp.float32),
        "mel_w": mel_w, "mel_b": mel_b,
    }


# --------------------------- main ---------------------------------------------

if __name__ == "__main__":
    cfg = {
        "vocab_size": 40,
        "max_seq_len": 512,
        "encoder_dim": 32,
        "decoder_dim": 32,
        "encoder_n_layer": 1,
        "decoder_n_layer": 1,
        "n_head": 2,
        "d_k": 16,
        "d_v": 16,
        "conv_filter": 64,
        "fft_conv1d_kernel": (9, 1),
        "fft_conv1d_padding": (4, 0),
        "duration_predictor_filter_size": 32,   # == decoder_dim so pitch/energy emb add cleanly
        "duration_predictor_kernel_size": 3,
        "num_mels": 16,
    }

    key = jax.random.PRNGKey(0)
    k_par, k_seq = jax.random.split(key)
    params = init_fastspeech_params(k_par, cfg)

    batch, seq = 2, 8
    src_seq = jax.random.randint(k_seq, (batch, seq), 1, cfg["vocab_size"], dtype=jnp.int32)
    src_pos = jnp.broadcast_to(jnp.arange(1, seq + 1, dtype=jnp.int32)[None, :], (batch, seq))

    mel, duration, energy, pitch = fastspeech_forward(params, src_seq, src_pos, cfg, alpha=1.0)
    jax.block_until_ready((mel, duration, energy, pitch))
    print("KERNEL_OK")
</pallas_src>

<mosaic_0001>
module attributes {stable_mosaic.version = 11 : i64} {
  func.func @_linear_kernel(%arg0: i32, %arg1: memref<16x32xf32, #tpu.memory_space<vmem>>, %arg2: memref<32x96xf32, #tpu.memory_space<vmem>>, %arg3: memref<1x96xf32, #tpu.memory_space<vmem>>, %arg4: memref<16x96xf32, #tpu.memory_space<vmem>>) attributes {dimension_semantics = [#tpu.dimension_semantics<parallel>], iteration_bounds = array<i64: 1>, scalar_prefetch = 0 : i64, scratch_operands = 0 : i64, tpu.core_type = #tpu.core_type<tc>, window_params = [{transform_indices = @transform_0, window_bounds = array<i64: 16, 32>}, {pipeline_mode = #tpu.pipeline_mode<synchronous>, transform_indices = @transform_1, window_bounds = array<i64: 32, 96>}, {pipeline_mode = #tpu.pipeline_mode<synchronous>, transform_indices = @transform_2, window_bounds = array<i64: 1, 96>}, {transform_indices = @transform_3, window_bounds = array<i64: 16, 96>}]} {
    %c0 = arith.constant 0 : index
    %c0_0 = arith.constant 0 : index
    %0 = vector.load %arg1[%c0, %c0_0] : memref<16x32xf32, #tpu.memory_space<vmem>>, vector<16x32xf32>
    %c0_1 = arith.constant 0 : index
    %c0_2 = arith.constant 0 : index
    %1 = vector.load %arg2[%c0_1, %c0_2] : memref<32x96xf32, #tpu.memory_space<vmem>>, vector<32x96xf32>
    %cst = arith.constant dense<0.000000e+00> : vector<16x96xf32>
    %2 = tpu.matmul %0, %1, %cst {dimension_numbers = #tpu.dot_dimension_numbers<[1], [0], [0], [1], [0, 0, 1, 1], [], []>} : vector<16x32xf32>, vector<32x96xf32>, vector<16x96xf32> -> vector<16x96xf32>
    %c0_3 = arith.constant 0 : index
    %c0_4 = arith.constant 0 : index
    %3 = vector.load %arg3[%c0_3, %c0_4] : memref<1x96xf32, #tpu.memory_space<vmem>>, vector<1x96xf32>
    %4 = vector.broadcast %3 : vector<1x96xf32> to vector<16x96xf32>
    %5 = arith.addf %2, %4 : vector<16x96xf32>
    %c0_5 = arith.constant 0 : index
    %c0_6 = arith.constant 0 : index
    %6 = vector.load %arg4[%c0_5, %c0_6] : memref<16x96xf32, #tpu.memory_space<vmem>>, vector<16x96xf32>
    tpu.vector_store %arg4[%c0_5, %c0_6], %5 {strides = array<i32>} : memref<16x96xf32, #tpu.memory_space<vmem>>, vector<16x96xf32>,
    return
  }
  func.func @transform_0(%arg0: i32) -> (i32, i32) {
    %c0_i32 = arith.constant 0 : i32
    %c0_i32_0 = arith.constant 0 : i32
    return %arg0, %c0_i32 : i32, i32
  }
  func.func @transform_1(%arg0: i32) -> (i32, i32) {
    %c0_i32 = arith.constant 0 : i32
    %c0_i32_0 = arith.constant 0 : i32
    %c0_i32_1 = arith.constant 0 : i32
    return %c0_i32, %c0_i32_0 : i32, i32
  }
  func.func @transform_2(%arg0: i32) -> (i32, i32) {
    %c0_i32 = arith.constant 0 : i32
    %c0_i32_0 = arith.constant 0 : i32
    %c0_i32_1 = arith.constant 0 : i32
    return %c0_i32, %c0_i32_0 : i32, i32
  }
  func.func @transform_3(%arg0: i32) -> (i32, i32) {
    %c0_i32 = arith.constant 0 : i32
    %c0_i32_0 = arith.constant 0 : i32
    return %arg0, %c0_i32 : i32, i32
  }
}

</mosaic_0001>

<llo_original>
// kernel: tpu_custom_call.1
$region0: #{tpu_custom_call.1}
  #allocation0 [shape = 'u32[]', space=smem, size = 0x4, offset = 0x4, fixed_abs, tag = 'smem constant byte address 0x4 - core index']
  #allocation1 [shape = 'u32[144,128]{1,0:T(1,128)}', space=vmem, size = 0x12000, scoped, tag = 'internal scratch']
  %s0 = inlined_call_operand.hbm [shape: f32[16,32], index: 0, kind: input, shape index: {}]
  %s1 = inlined_call_operand.hbm [shape: f32[32,96], index: 1, kind: input, shape index: {}]
  %s2 = inlined_call_operand.vmem [shape: f32[1,96], index: 2, kind: input, shape index: {}]
  %s3 = inlined_call_operand.hbm [shape: f32[16,96], index: 3, kind: output, shape index: {}]
  %s4 = sld [smem:[#allocation0]]
  $region30: #{tpu_custom_call.1} parent=0
    _
  %s6 = ssub.s32 1, %s4
  %s7 = scalar_select 0, %s6, %s4
  $region1: #{tpu_custom_call.1} parent=0
    #allocation2 [shape = 'u8[8192]{0}', space=vmem, size = 0x2000, scoped, tag = 'input window, operand 0, single buffered']
    #allocation3 [shape = 's32[1]{0}', space=sflag, size = 0x4, scoped, tag = 'scoped memory for tpu_custom_call.1']
    #allocation4 [shape = 's32[1]{0}', space=sflag, size = 0x4, scoped, tag = 'scoped memory for tpu_custom_call.1']
    #allocation5 [shape = 'u8[16384]{0}', space=vmem, size = 0x4000, scoped, tag = 'input window, operand 1, single buffered']
    #allocation6 [shape = 's32[1]{0}', space=sflag, size = 0x4, scoped, tag = 'scoped memory for tpu_custom_call.1']
    #allocation7 [shape = 'u8[8192]{0}', space=vmem, size = 0x2000, scoped, tag = 'output window, operand 0, single buffered']
    %8 = vsyncpa [#allocation3], 0
    %9 = vsyncpa [#allocation6], 0
    %10 = vsyncpa [#allocation4], 0
    // Predicated region
    $region2: #{tpu_custom_call.1} parent=1 // pred_check
      _
    $region3: #{tpu_custom_call.1} parent=1 // pred_check_branch
      %12 = sbr.rel (0) target = $region5
    $region4: #{tpu_custom_call.1} parent=1 // pred_region
      %s14 = ssub.s32 256, 256
      %15 = vsyncadd [#allocation3], %s14
      %s16 = sshll.u32 [#allocation2], 4
      %s17 = int_to_ptr.vmem [resolvable:$true] %s16
      %22 = dma.hbm_to_vmem [thread:$0]  %s0, 256, %s17, [#allocation3], 128, 128, 8
    $region5: #{tpu_custom_call.1} parent=1 // pred_fallthru
      _
    // Predicated region
    $region6: #{tpu_custom_call.1} parent=1 // pred_check
      _
    $region7: #{tpu_custom_call.1} parent=1 // pred_check_branch
      %24 = sbr.rel (0) target = $region9
    $region8: #{tpu_custom_call.1} parent=1 // pred_region
      %s26 = ssub.s32 512, 512
      %27 = vsyncadd [#allocation6], %s26
      %s28 = sshll.u32 [#allocation5], 4
      %s29 = int_to_ptr.vmem [resolvable:$true] %s28
      %34 = dma.hbm_to_vmem [thread:$0]  %s1, 512, %s29, [#allocation6], 128, 128, 8
    $region9: #{tpu_custom_call.1} parent=1 // pred_fallthru
      _
    // Predicated region
    $region10: #{tpu_custom_call.1} parent=1 // pred_check
      _
    $region11: #{tpu_custom_call.1} parent=1 // pred_check_branch
      %36 = sbr.rel (0) target = $region13
    $region12: #{tpu_custom_call.1} parent=1 // pred_region
      _
    $region13: #{tpu_custom_call.1} parent=1 // pred_fallthru
      _
    // Predicated region
    $region14: #{tpu_custom_call.1} parent=1 // pred_check
      _
    $region15: #{tpu_custom_call.1} parent=1 // pred_check_branch
      %38 = sbr.rel (0) target = $region17
    $region16: #{tpu_custom_call.1} parent=1 // pred_region
      %39 = dma.done [#allocation3], 256
    $region17: #{tpu_custom_call.1} parent=1 // pred_fallthru
      _
    // Predicated region
    $region18: #{tpu_custom_call.1} parent=1 // pred_check
      _
    $region19: #{tpu_custom_call.1} parent=1 // pred_check_branch
      %41 = sbr.rel (0) target = $region21
    $region20: #{tpu_custom_call.1} parent=1 // pred_region
      %42 = dma.done [#allocation6], 512
    $region21: #{tpu_custom_call.1} parent=1 // pred_fallthru
      _
    %v43 = vld [vmem:[#allocation2] sm:$0xff]
    %v44 = vld [vmem:[#allocation2 + $0x8] sm:$0xff]
    %v45 = vld [vmem:[#allocation5] sm:$0xff]
    %v46 = vld [vmem:[#allocation5 + $0x8] sm:$0xff]
    %v47 = vld [vmem:[#allocation5 + $0x10] sm:$0xff]
    %v48 = vld [vmem:[#allocation5 + $0x18] sm:$0xff]
    %v49 = vld [vmem:[%s2] sm:$0x1]
    %v51 = vlaneseq
    %v52 = vshrl.u32 %v51, 7
    %v53 = vsub.s32 0, %v52
    %v54 = vrot.slane %v49, %v53
    %vm56 = vcmask 261120
    %v58 = vsel %vm56, %v43, 0
    %v61 = vsel %vm56, %v44, 0
    %63 = vmatprep.subr.mxu0 0.0
    %64 = vmatpush1.msra.mxu0 0.0
    %65 = vmatprep.subr.mxu0 0.0
    %66 = vmatpush1.msra.mxu0 0.0
    %67 = vmatprep.subr.mxu0 0.0
    %68 = vmatpush1.msra.mxu0 0.0
    %69 = vmatprep.subr.mxu0 0.0
    %70 = vmatpush1.msra.mxu0 0.0
    %71 = vmatprep.subr.mxu0 0.0
    %72 = vmatpush1.msra.mxu0 0.0
    %73 = vmatprep.subr.mxu0 0.0
    %74 = vmatpush1.msra.mxu0 0.0
    %75 = vmatprep.subr.mxu0 0.0
    %76 = vmatpush1.msra.mxu0 0.0
    %77 = vmatprep.subr.mxu0 0.0
    %78 = vmatpush1.msra.mxu0 0.0
    %79 = vmatprep.subr.mxu0 0.0
    %80 = vmatpush1.msra.mxu0 0.0
    %81 = vmatprep.subr.mxu0 0.0
    %82 = vmatpush1.msra.mxu0 0.0
    %83 = vmatprep.subr.mxu0 0.0
    %84 = vmatpush1.msra.mxu0 0.0
    %85 = vmatprep.subr.mxu0 0.0
    %86 = vmatpush1.msra.mxu0 0.0
    %87 = vmatprep.subr.mxu0 0.0
    %88 = vmatpush1.msra.mxu0 %v48
    %89 = vmatprep.subr.mxu0 0.0
    %90 = vmatpush1.msra.mxu0 %v47
    %91 = vmatprep.subr.mxu0 0.0
    %92 = vmatpush1.msra.mxu0 %v46
    %93 = vmatprep.subr.mxu0 0.0
    %94 = vmatpush1.msra.mxu0 %v45
    %95 = vmatprep.subr.mxu0 0.0
    %96 = vmatpush2.msra.mxu0 0.0
    %97 = vmatprep.subr.mxu0 0.0
    %98 = vmatpush2.msra.mxu0 0.0
    %99 = vmatprep.subr.mxu0 0.0
    %100 = vmatpush2.msra.mxu0 0.0
    %101 = vmatprep.subr.mxu0 0.0
    %102 = vmatpush2.msra.mxu0 0.0
    %103 = vmatprep.subr.mxu0 0.0
    %104 = vmatpush2.msra.mxu0 0.0
    %105 = vmatprep.subr.mxu0 0.0
    %106 = vmatpush2.msra.mxu0 0.0
    %107 = vmatprep.subr.mxu0 0.0
    %108 = vmatpush2.msra.mxu0 0.0
    %109 = vmatprep.subr.mxu0 0.0
    %110 = vmatpush2.msra.mxu0 0.0
    %111 = vmatprep.subr.mxu0 0.0
    %112 = vmatpush2.msra.mxu0 0.0
    %113 = vmatprep.subr.mxu0 0.0
    %114 = vmatpush2.msra.mxu0 0.0
    %115 = vmatprep.subr.mxu0 0.0
    %116 = vmatpush2.msra.mxu0 0.0
    %117 = vmatprep.subr.mxu0 0.0
    %118 = vmatpush2.msra.mxu0 0.0
    %119 = vmatprep.subr.mxu0 0.0
    %120 = vmatpush2.msra.mxu0 0.0
    %121 = vmatprep.subr.mxu0 0.0
    %122 = vmatpush2.msra.mxu0 0.0
    %123 = vmatprep.subr.mxu0 0.0
    %124 = vmatpush2.msra.mxu0 0.0
    %125 = vmatprep.subr.mxu0 0.0
    %126 = vmatpush2.msra.mxu0 0.0
    %127 = vmatprep.mubr.f32.mxu0 0.0
    %128 = vmatmul.mubr.f32.gmra.mxu0 %v58
    %v129 = vpop.f32.mrf.mxu0
    %v130 = vadd.f32 %v54, %v129
    %v131 = vpop.f32.mrf.mxu0
    %132 = vmatprep.mubr.f32.mxu0 0.0
    %133 = vmatmul.mubr.f32.gmra.mxu0 %v61
    %v134 = vpop.f32.mrf.mxu0
    %v135 = vadd.f32 %v54, %v134
    %v136 = vpop.f32.mrf.mxu0
    %137 = vdwg.mxu0
    %vm138 = vcmask 785408
    %139 = vst.msk [vmem:[#allocation7] sm:$0xff] %vm138, %v130
    %140 = vst.msk [vmem:[#allocation7 + $0x8] sm:$0xff] %vm138, %v135
    // Predicated region
    $region22: #{tpu_custom_call.1} parent=1 // pred_check
      _
    $region23: #{tpu_custom_call.1} parent=1 // pred_check_branch
      %142 = sbr.rel (0) target = $region25
    $region24: #{tpu_custom_call.1} parent=1 // pred_region
      %s144 = ssub.s32 256, 256
      %145 = vsyncadd [#allocation4], %s144
      %s146 = sshll.u32 [#allocation7], 4
      %s147 = int_to_ptr.vmem [resolvable:$true] %s146
      %152 = dma.vmem_to_hbm [thread:$0]  %s147, 256, %s3, [#allocation4], 128, 128, 8
    $region25: #{tpu_custom_call.1} parent=1 // pred_fallthru
      _
    // Predicated region
    $region26: #{tpu_custom_call.1} parent=1 // pred_check
      _
    $region27: #{tpu_custom_call.1} parent=1 // pred_check_branch
      %154 = sbr.rel (0) target = $region29
    $region28: #{tpu_custom_call.1} parent=1 // pred_region
      %155 = dma.done [#allocation4], 256
    $region29: #{tpu_custom_call.1} parent=1 // pred_fallthru
      _
    %156 = vsyncpa [#allocation3], 1
    %157 = vsyncpa [#allocation6], 1
    %158 = vsyncpa [#allocation4], 1

</llo_original>
